<compile_context>
chip_gen: v7x
topology: tpu7x:2x2x1
jax: 0.10.0
libtpu: 0.0.40
codegen_flags: <defaults>
</compile_context>

<pallas_src>
import functools

import jax
import jax.numpy as jnp
from jax.experimental import pallas as pl
from jax.experimental.pallas import tpu as pltpu


def _round_up(n: int, m: int) -> int:
    return (n + m - 1) // m * m


def _choose_block_b(batch: int, max_block: int) -> int:
    """Adaptive batch tile.

    Small batches -> 16-row tile (bf16 sublane-pack minimum) for low latency;
    large batches -> big tiles, but capped so the grid keeps >= 2 steps and the
    "parallel" axis can use both TensorCores on v7x.
    """
    b16 = _round_up(max(batch, 1), 16)
    if b16 <= 32:
        return 16
    half = _round_up((b16 + 1) // 2, 16)   # keep at least 2 grid steps
    return min(max_block, half)


def qnetwork_kernel(x_ref, w1_ref, b1_ref, w2_ref, b2_ref, w3_ref, b3_ref, o_ref):
    """Fused 3-layer MLP tile: relu(x@W1+b1) -> relu(.@W2+b2) -> .@W3+b3."""
    # x arrives unpadded (TB, state_size) f32; cast to bf16 in-register so the
    # MXU runs at the bf16 rate with f32 accumulation. Bias add + ReLU in f32
    # (v5e VPU has no bf16 ALU).
    x = x_ref[...].astype(jnp.bfloat16)

    h1 = jnp.dot(x, w1_ref[...], preferred_element_type=jnp.float32)
    h1 = jnp.maximum(h1 + b1_ref[...], 0.0)                          # (TB, 128) f32

    h2 = jnp.dot(h1.astype(jnp.bfloat16), w2_ref[...],
                 preferred_element_type=jnp.float32)
    h2 = jnp.maximum(h2 + b2_ref[...], 0.0)                          # (TB, 256) f32

    out = jnp.dot(h2.astype(jnp.bfloat16), w3_ref[...],
                  preferred_element_type=jnp.float32)
    # Lane-dense (128-wide) bf16 writeback; padded columns are zero and get
    # sliced off outside the kernel.
    o_ref[...] = (out + b3_ref[...]).astype(o_ref.dtype)


def prepare_params(w1, b1, w2, b2, w3, b3, *, action_pad=128):
    """One-time cast/pad of parameters (hoisted out of the per-call path).

    Weights are (in_features, out_features) so the kernel computes x @ W + b.
    W3 / b3 are zero-padded on the output dim to a lane-dense width so the
    kernel's output slab stays lane-dense (unmasked stores).
    """
    hidden2, action_size = w3.shape
    d_out = _round_up(action_size, action_pad)

    w1p = jnp.asarray(w1, jnp.bfloat16)                      # (state_size, 128)
    w2p = jnp.asarray(w2, jnp.bfloat16)                      # (128, 256)
    w3p = jnp.zeros((hidden2, d_out), jnp.bfloat16)
    w3p = w3p.at[:, :action_size].set(jnp.asarray(w3, jnp.bfloat16))
    b1p = jnp.asarray(b1, jnp.float32).reshape(1, -1)
    b2p = jnp.asarray(b2, jnp.float32).reshape(1, -1)
    b3p = jnp.zeros((1, d_out), jnp.float32)
    b3p = b3p.at[:, :action_size].set(jnp.asarray(b3, jnp.float32).reshape(1, -1))
    return (w1p, b1p, w2p, b2p, w3p, b3p)


@functools.partial(jax.jit, static_argnames=("action_size", "max_block"))
def qnetwork_forward(x, params, *, action_size, max_block=512):
    w1p, b1p, w2p, b2p, w3p, b3p = params
    batch, state_size = x.shape
    hidden1 = w1p.shape[1]
    hidden2 = w2p.shape[1]
    d_out = w3p.shape[1]

    block_b = _choose_block_b(batch, max_block)
    b_pad = _round_up(max(batch, 1), block_b)
    num_blocks = b_pad // block_b

    x = x.astype(jnp.float32)
    if b_pad != batch:
        # Only batch-dim zero padding (no lane padding, no dtype pass).
        x = jnp.pad(x, ((0, b_pad - batch), (0, 0)))

    grid_spec = pltpu.PrefetchScalarGridSpec(
        num_scalar_prefetch=0,
        grid=(num_blocks,),
        in_specs=[
            pl.BlockSpec((block_b, state_size), lambda i: (i, 0)),   # x: batch-tiled
            pl.BlockSpec((state_size, hidden1), lambda i: (0, 0)),   # W1: resident
            pl.BlockSpec((1, hidden1), lambda i: (0, 0)),            # b1: resident
            pl.BlockSpec((hidden1, hidden2), lambda i: (0, 0)),      # W2: resident
            pl.BlockSpec((1, hidden2), lambda i: (0, 0)),            # b2: resident
            pl.BlockSpec((hidden2, d_out), lambda i: (0, 0)),        # W3: resident
            pl.BlockSpec((1, d_out), lambda i: (0, 0)),              # b3: resident
        ],
        out_specs=pl.BlockSpec((block_b, d_out), lambda i: (i, 0)),
    )

    flops = 2 * b_pad * (state_size * hidden1 + hidden1 * hidden2 + hidden2 * d_out)
    bytes_accessed = (
        b_pad * state_size * 4                                            # x (f32)
        + (state_size * hidden1 + hidden1 * hidden2 + hidden2 * d_out) * 2  # weights (bf16)
        + (hidden1 + hidden2 + d_out) * 4                                 # biases (f32)
        + b_pad * d_out * 2                                               # out (bf16)
    )

    out_padded = pl.pallas_call(
        qnetwork_kernel,
        out_shape=jax.ShapeDtypeStruct((b_pad, d_out), jnp.bfloat16),
        grid_spec=grid_spec,
        compiler_params=pltpu.CompilerParams(
            dimension_semantics=("parallel",)),
        cost_estimate=pl.CostEstimate(
            flops=flops, transcendentals=0, bytes_accessed=bytes_accessed),
    )(x, w1p, b1p, w2p, b2p, w3p, b3p)

    return out_padded[:batch, :action_size].astype(jnp.float32)


def init_linear_params(key, fan_in, fan_out):
    """Deterministic init mimicking PyTorch nn.Linear default (U[-1/sqrt(fan_in), +])."""
    kw, kb = jax.random.split(key)
    bound = 1.0 / jnp.sqrt(jnp.float32(fan_in))
    # stored as (in, out) so the kernel can do x @ W
    w = jax.random.uniform(kw, (fan_in, fan_out), jnp.float32, -bound, bound)
    b = jax.random.uniform(kb, (1, fan_out), jnp.float32, -bound, bound)
    return w, b


def _reference(x, w1, b1, w2, b2, w3, b3):
    h1 = jnp.maximum(x @ w1 + b1, 0.0)
    h2 = jnp.maximum(h1 @ w2 + b2, 0.0)
    return h2 @ w3 + b3


if __name__ == "__main__":
    # Banana environment: state_size=37, action_size=4 (true to the module).
    state_size = 37
    action_size = 4

    root = jax.random.PRNGKey(0)
    k_x, k_x2, k1, k2, k3 = jax.random.split(root, 5)

    w1, b1 = init_linear_params(k1, state_size, 128)
    w2, b2 = init_linear_params(k2, 128, 256)
    w3, b3 = init_linear_params(k3, 256, action_size)

    # One-time parameter prep (bf16 cast + lane padding of the last layer).
    params = prepare_params(w1, b1, w2, b2, w3, b3)
    params = jax.block_until_ready(params)

    # Small single-tile case (batch=2 -> one 16-row tile: low-latency path).
    x_small = jax.random.normal(k_x, (2, state_size), jnp.float32)
    q_small = qnetwork_forward(x_small, params, action_size=action_size)
    jax.block_until_ready(q_small)
    ref_small = _reference(x_small, w1, b1, w2, b2, w3, b3)
    assert q_small.shape == (2, action_size)
    assert jnp.allclose(q_small, ref_small, atol=3e-2, rtol=3e-2), (
        float(jnp.max(jnp.abs(q_small - ref_small))))

    # Multi-tile case (batch=300 -> two 160-row grid steps, ragged batch pad,
    # exercises the >=2-step / megacore-parallel path).
    x_big = jax.random.normal(k_x2, (300, state_size), jnp.float32)
    q_big = qnetwork_forward(x_big, params, action_size=action_size)
    jax.block_until_ready(q_big)
    ref_big = _reference(x_big, w1, b1, w2, b2, w3, b3)
    assert q_big.shape == (300, action_size)
    assert jnp.allclose(q_big, ref_big, atol=3e-2, rtol=3e-2), (
        float(jnp.max(jnp.abs(q_big - ref_big))))

    print("KERNEL_OK")
</pallas_src>

<mosaic_0001>
module attributes {stable_mosaic.version = 11 : i64} {
  func.func @qnetwork_kernel(%arg0: i32, %arg1: memref<16x37xf32, #tpu.memory_space<vmem>>, %arg2: memref<37x128xbf16, #tpu.memory_space<vmem>>, %arg3: memref<1x128xf32, #tpu.memory_space<vmem>>, %arg4: memref<128x256xbf16, #tpu.memory_space<vmem>>, %arg5: memref<1x256xf32, #tpu.memory_space<vmem>>, %arg6: memref<256x128xbf16, #tpu.memory_space<vmem>>, %arg7: memref<1x128xf32, #tpu.memory_space<vmem>>, %arg8: memref<16x128xbf16, #tpu.memory_space<vmem>>) attributes {dimension_semantics = [#tpu.dimension_semantics<parallel>], iteration_bounds = array<i64: 1>, scalar_prefetch = 0 : i64, scratch_operands = 0 : i64, tpu.core_type = #tpu.core_type<tc>, window_params = [{transform_indices = @transform_0, window_bounds = array<i64: 16, 37>}, {pipeline_mode = #tpu.pipeline_mode<synchronous>, transform_indices = @transform_1, window_bounds = array<i64: 37, 128>}, {pipeline_mode = #tpu.pipeline_mode<synchronous>, transform_indices = @transform_2, window_bounds = array<i64: 1, 128>}, {pipeline_mode = #tpu.pipeline_mode<synchronous>, transform_indices = @transform_3, window_bounds = array<i64: 128, 256>}, {pipeline_mode = #tpu.pipeline_mode<synchronous>, transform_indices = @transform_4, window_bounds = array<i64: 1, 256>}, {pipeline_mode = #tpu.pipeline_mode<synchronous>, transform_indices = @transform_5, window_bounds = array<i64: 256, 128>}, {pipeline_mode = #tpu.pipeline_mode<synchronous>, transform_indices = @transform_6, window_bounds = array<i64: 1, 128>}, {transform_indices = @transform_7, window_bounds = array<i64: 16, 128>}]} {
    %c0 = arith.constant 0 : index
    %c0_0 = arith.constant 0 : index
    %0 = vector.load %arg1[%c0, %c0_0] : memref<16x37xf32, #tpu.memory_space<vmem>>, vector<16x37xf32>
    %1 = arith.truncf %0 : vector<16x37xf32> to vector<16x37xbf16>
    %c0_1 = arith.constant 0 : index
    %c0_2 = arith.constant 0 : index
    %2 = vector.load %arg2[%c0_1, %c0_2] : memref<37x128xbf16, #tpu.memory_space<vmem>>, vector<37x128xbf16>
    %cst = arith.constant dense<0.000000e+00> : vector<16x128xf32>
    %3 = tpu.matmul %1, %2, %cst {dimension_numbers = #tpu.dot_dimension_numbers<[1], [0], [0], [1], [0, 0, 1, 1], [], []>} : vector<16x37xbf16>, vector<37x128xbf16>, vector<16x128xf32> -> vector<16x128xf32>
    %c0_3 = arith.constant 0 : index
    %c0_4 = arith.constant 0 : index
    %4 = vector.load %arg3[%c0_3, %c0_4] : memref<1x128xf32, #tpu.memory_space<vmem>>, vector<1x128xf32>
    %5 = vector.broadcast %4 : vector<1x128xf32> to vector<16x128xf32>
    %6 = arith.addf %3, %5 : vector<16x128xf32>
    %cst_5 = arith.constant 0.000000e+00 : f32
    %7 = vector.broadcast %cst_5 : f32 to vector<16x128xf32>
    %8 = arith.maximumf %6, %7 : vector<16x128xf32>
    %9 = arith.truncf %8 : vector<16x128xf32> to vector<16x128xbf16>
    %c0_6 = arith.constant 0 : index
    %c0_7 = arith.constant 0 : index
    %10 = vector.load %arg4[%c0_6, %c0_7] : memref<128x256xbf16, #tpu.memory_space<vmem>>, vector<128x256xbf16>
    %cst_8 = arith.constant dense<0.000000e+00> : vector<16x256xf32>
    %11 = tpu.matmul %9, %10, %cst_8 {dimension_numbers = #tpu.dot_dimension_numbers<[1], [0], [0], [1], [0, 0, 1, 1], [], []>} : vector<16x128xbf16>, vector<128x256xbf16>, vector<16x256xf32> -> vector<16x256xf32>
    %c0_9 = arith.constant 0 : index
    %c0_10 = arith.constant 0 : index
    %12 = vector.load %arg5[%c0_9, %c0_10] : memref<1x256xf32, #tpu.memory_space<vmem>>, vector<1x256xf32>
    %13 = vector.broadcast %12 : vector<1x256xf32> to vector<16x256xf32>
    %14 = arith.addf %11, %13 : vector<16x256xf32>
    %cst_11 = arith.constant 0.000000e+00 : f32
    %15 = vector.broadcast %cst_11 : f32 to vector<16x256xf32>
    %16 = arith.maximumf %14, %15 : vector<16x256xf32>
    %17 = arith.truncf %16 : vector<16x256xf32> to vector<16x256xbf16>
    %c0_12 = arith.constant 0 : index
    %c0_13 = arith.constant 0 : index
    %18 = vector.load %arg6[%c0_12, %c0_13] : memref<256x128xbf16, #tpu.memory_space<vmem>>, vector<256x128xbf16>
    %cst_14 = arith.constant dense<0.000000e+00> : vector<16x128xf32>
    %19 = tpu.matmul %17, %18, %cst_14 {dimension_numbers = #tpu.dot_dimension_numbers<[1], [0], [0], [1], [0, 0, 1, 1], [], []>} : vector<16x256xbf16>, vector<256x128xbf16>, vector<16x128xf32> -> vector<16x128xf32>
    %c0_15 = arith.constant 0 : index
    %c0_16 = arith.constant 0 : index
    %20 = vector.load %arg7[%c0_15, %c0_16] : memref<1x128xf32, #tpu.memory_space<vmem>>, vector<1x128xf32>
    %21 = vector.broadcast %20 : vector<1x128xf32> to vector<16x128xf32>
    %22 = arith.addf %19, %21 : vector<16x128xf32>
    %23 = arith.truncf %22 : vector<16x128xf32> to vector<16x128xbf16>
    %c0_17 = arith.constant 0 : index
    %c0_18 = arith.constant 0 : index
    %24 = vector.load %arg8[%c0_17, %c0_18] : memref<16x128xbf16, #tpu.memory_space<vmem>>, vector<16x128xbf16>
    tpu.vector_store %arg8[%c0_17, %c0_18], %23 {strides = array<i32>} : memref<16x128xbf16, #tpu.memory_space<vmem>>, vector<16x128xbf16>,
    return
  }
  func.func @transform_0(%arg0: i32) -> (i32, i32) {
    %c0_i32 = arith.constant 0 : i32
    %c0_i32_0 = arith.constant 0 : i32
    return %arg0, %c0_i32 : i32, i32
  }
  func.func @transform_1(%arg0: i32) -> (i32, i32) {
    %c0_i32 = arith.constant 0 : i32
    %c0_i32_0 = arith.constant 0 : i32
    %c0_i32_1 = arith.constant 0 : i32
    return %c0_i32, %c0_i32_0 : i32, i32
  }
  func.func @transform_2(%arg0: i32) -> (i32, i32) {
    %c0_i32 = arith.constant 0 : i32
    %c0_i32_0 = arith.constant 0 : i32
    %c0_i32_1 = arith.constant 0 : i32
    return %c0_i32, %c0_i32_0 : i32, i32
  }
  func.func @transform_3(%arg0: i32) -> (i32, i32) {
    %c0_i32 = arith.constant 0 : i32
    %c0_i32_0 = arith.constant 0 : i32
    %c0_i32_1 = arith.constant 0 : i32
    return %c0_i32, %c0_i32_0 : i32, i32
  }
  func.func @transform_4(%arg0: i32) -> (i32, i32) {
    %c0_i32 = arith.constant 0 : i32
    %c0_i32_0 = arith.constant 0 : i32
    %c0_i32_1 = arith.constant 0 : i32
    return %c0_i32, %c0_i32_0 : i32, i32
  }
  func.func @transform_5(%arg0: i32) -> (i32, i32) {
    %c0_i32 = arith.constant 0 : i32
    %c0_i32_0 = arith.constant 0 : i32
    %c0_i32_1 = arith.constant 0 : i32
    return %c0_i32, %c0_i32_0 : i32, i32
  }
  func.func @transform_6(%arg0: i32) -> (i32, i32) {
    %c0_i32 = arith.constant 0 : i32
    %c0_i32_0 = arith.constant 0 : i32
    %c0_i32_1 = arith.constant 0 : i32
    return %c0_i32, %c0_i32_0 : i32, i32
  }
  func.func @transform_7(%arg0: i32) -> (i32, i32) {
    %c0_i32 = arith.constant 0 : i32
    %c0_i32_0 = arith.constant 0 : i32
    return %arg0, %c0_i32 : i32, i32
  }
}

</mosaic_0001>

<llo_original>
// kernel: qnetwork_forward.1
$region0: #{qnetwork_forward.1}
  #allocation0 [shape = 'u32[]', space=smem, size = 0x4, offset = 0x4, fixed_abs, tag = 'smem constant byte address 0x4 - core index']
  #allocation1 [shape = 'u32[144,128]{1,0:T(1,128)}', space=vmem, size = 0x12000, scoped, tag = 'internal scratch']
  %s0 = inlined_call_operand.vmem [shape: f32[16,37], index: 0, kind: input, shape index: {}]
  %s1 = inlined_call_operand.vmem [shape: bf16[37,128], index: 1, kind: input, shape index: {}]
  %s2 = inlined_call_operand.vmem [shape: f32[1,128], index: 2, kind: input, shape index: {}]
  %s3 = inlined_call_operand.hbm [shape: bf16[128,256], index: 3, kind: input, shape index: {}]
  %s4 = inlined_call_operand.vmem [shape: f32[1,256], index: 4, kind: input, shape index: {}]
  %s5 = inlined_call_operand.hbm [shape: bf16[256,128], index: 5, kind: input, shape index: {}]
  %s6 = inlined_call_operand.vmem [shape: f32[1,128], index: 6, kind: input, shape index: {}]
  %s7 = inlined_call_operand.vmem [shape: bf16[16,128], index: 7, kind: output, shape index: {}]
  %s8 = sld [smem:[#allocation0]]
  $region46: #{qnetwork_forward.1} parent=0
    _
  %s10 = ssub.s32 1, %s8
  %s11 = scalar_select 0, %s10, %s8
  $region1: #{qnetwork_forward.1} parent=0
    #allocation2 [shape = 'u8[65536]{0}', space=vmem, size = 0x10000, scoped, tag = 'input window, operand 3, single buffered']
    #allocation3 [shape = 's32[1]{0}', space=sflag, size = 0x4, scoped, tag = 'scoped memory for qnetwork_forward.1']
    #allocation4 [shape = 'u8[65536]{0}', space=vmem, size = 0x10000, scoped, tag = 'input window, operand 5, single buffered']
    #allocation5 [shape = 's32[1]{0}', space=sflag, size = 0x4, scoped, tag = 'scoped memory for qnetwork_forward.1']
    %12 = vsyncpa [#allocation3], 0
    %13 = vsyncpa [#allocation5], 0
    // Predicated region
    $region2: #{qnetwork_forward.1} parent=1 // pred_check
      _
    $region3: #{qnetwork_forward.1} parent=1 // pred_check_branch
      %15 = sbr.rel (0) target = $region5
    $region4: #{qnetwork_forward.1} parent=1 // pred_region
      _
    $region5: #{qnetwork_forward.1} parent=1 // pred_fallthru
      _
    // Predicated region
    $region6: #{qnetwork_forward.1} parent=1 // pred_check
      _
    $region7: #{qnetwork_forward.1} parent=1 // pred_check_branch
      %17 = sbr.rel (0) target = $region9
    $region8: #{qnetwork_forward.1} parent=1 // pred_region
      _
    $region9: #{qnetwork_forward.1} parent=1 // pred_fallthru
      _
    // Predicated region
    $region10: #{qnetwork_forward.1} parent=1 // pred_check
      _
    $region11: #{qnetwork_forward.1} parent=1 // pred_check_branch
      %19 = sbr.rel (0) target = $region13
    $region12: #{qnetwork_forward.1} parent=1 // pred_region
      _
    $region13: #{qnetwork_forward.1} parent=1 // pred_fallthru
      _
    // Predicated region
    $region14: #{qnetwork_forward.1} parent=1 // pred_check
      _
    $region15: #{qnetwork_forward.1} parent=1 // pred_check_branch
      %21 = sbr.rel (0) target = $region17
    $region16: #{qnetwork_forward.1} parent=1 // pred_region
      %s23 = ssub.s32 2048, 2048
      %24 = vsyncadd [#allocation3], %s23
      %s25 = sshll.u32 [#allocation2], 4
      %s26 = int_to_ptr.vmem [resolvable:$true] %s25
      %31 = dma.hbm_to_vmem [thread:$0]  %s3, 2048, %s26, [#allocation3], 128, 128, 8
    $region17: #{qnetwork_forward.1} parent=1 // pred_fallthru
      _
    // Predicated region
    $region18: #{qnetwork_forward.1} parent=1 // pred_check
      _
    $region19: #{qnetwork_forward.1} parent=1 // pred_check_branch
      %33 = sbr.rel (0) target = $region21
    $region20: #{qnetwork_forward.1} parent=1 // pred_region
      _
    $region21: #{qnetwork_forward.1} parent=1 // pred_fallthru
      _
    // Predicated region
    $region22: #{qnetwork_forward.1} parent=1 // pred_check
      _
    $region23: #{qnetwork_forward.1} parent=1 // pred_check_branch
      %35 = sbr.rel (0) target = $region25
    $region24: #{qnetwork_forward.1} parent=1 // pred_region
      %s37 = ssub.s32 2048, 2048
      %38 = vsyncadd [#allocation5], %s37
      %s39 = sshll.u32 [#allocation4], 4
      %s40 = int_to_ptr.vmem [resolvable:$true] %s39
      %45 = dma.hbm_to_vmem [thread:$0]  %s5, 2048, %s40, [#allocation5], 64, 64, 4
    $region25: #{qnetwork_forward.1} parent=1 // pred_fallthru
      _
    // Predicated region
    $region26: #{qnetwork_forward.1} parent=1 // pred_check
      _
    $region27: #{qnetwork_forward.1} parent=1 // pred_check_branch
      %47 = sbr.rel (0) target = $region29
    $region28: #{qnetwork_forward.1} parent=1 // pred_region
      _
    $region29: #{qnetwork_forward.1} parent=1 // pred_fallthru
      _
    // Predicated region
    $region30: #{qnetwork_forward.1} parent=1 // pred_check
      _
    $region31: #{qnetwork_forward.1} parent=1 // pred_check_branch
      %49 = sbr.rel (0) target = $region33
    $region32: #{qnetwork_forward.1} parent=1 // pred_region
      %50 = dma.done [#allocation3], 2048
    $region33: #{qnetwork_forward.1} parent=1 // pred_fallthru
      _
    // Predicated region
    $region34: #{qnetwork_forward.1} parent=1 // pred_check
      _
    $region35: #{qnetwork_forward.1} parent=1 // pred_check_branch
      %52 = sbr.rel (0) target = $region37
    $region36: #{qnetwork_forward.1} parent=1 // pred_region
      %53 = dma.done [#allocation5], 2048
    $region37: #{qnetwork_forward.1} parent=1 // pred_fallthru
      _
    %v55 = vld [vmem:[%s0] sm:$0xff]
    %v56 = vld [vmem:[%s0 + $0x8] sm:$0xff]
    %v57 = vpack.c.bf16 %v56, %v55
    %v58 = vld [vmem:[%s1] sm:$0xf]
    %v59 = vld [vmem:[%s1 + $0x4] sm:$0xf]
    %v60 = vld [vmem:[%s1 + $0x8] sm:$0xf]
    %v61 = vld [vmem:[%s1 + $0xc] sm:$0xf]
    %v62 = vld [vmem:[%s1 + $0x10] sm:$0x7]
    %v63 = vld [vmem:[%s2] sm:$0x1]
    %v65 = vlaneseq
    %v66 = vshrl.u32 %v65, 7
    %v67 = vsub.s32 0, %v66
    %v68 = vrot.slane %v63, %v67
    %v75 = vunpack.c.l.b16 %v58
    %v76 = vunpack.c.l.b16 %v59
    %v77 = vunpack.c.l.b16 %v60
    %v78 = vunpack.c.l.b16 %v61
    %v79 = vunpack.c.l.b16 %v62
    %v80 = vpack.c.b16 %v76, %v75
    %v81 = vpack.c.b16 %v78, %v77
    %v82 = vpack.c.b16 %v79, %v79
    %vm85 = vcmask 302080
    %v87 = vsel %vm85, %v57, 0
    %vm89 = vcmask 1041408
    %vm90 = vcmask 1042432
    %v91 = vsel %vm89, 4294967295, 65535
    %v92 = vsel %vm90, %v91, 0
    %v94 = vand.u32 %v82, %v92
    %96 = vmatprep.subr.bf16.mxu0 0
    %97 = vmatpush1.bf16.msra.mxu0 %v80
    %98 = vmatprep.subr.bf16.mxu0 0
    %99 = vmatpush1.bf16.msra.mxu0 %v81
    %100 = vmatprep.subr.bf16.mxu0 0
    %101 = vmatpush1.bf16.msra.mxu0 %v94
    %102 = vmatprep.subr.bf16.mxu0 0
    %103 = vmatpush1.bf16.msra.mxu0 0
    %104 = vmatprep.subr.bf16.mxu0 0
    %105 = vmatpush1.bf16.msra.mxu0 0
    %106 = vmatprep.subr.bf16.mxu0 0
    %107 = vmatpush1.bf16.msra.mxu0 0
    %108 = vmatprep.subr.bf16.mxu0 0
    %109 = vmatpush1.bf16.msra.mxu0 0
    %110 = vmatprep.subr.bf16.mxu0 0
    %111 = vmatpush1.bf16.msra.mxu0 0
    %112 = vmatprep.subr.bf16.mxu0 0
    %113 = vmatpush1.bf16.msra.mxu0 0
    %114 = vmatprep.subr.bf16.mxu0 0
    %115 = vmatpush1.bf16.msra.mxu0 0
    %116 = vmatprep.subr.bf16.mxu0 0
    %117 = vmatpush1.bf16.msra.mxu0 0
    %118 = vmatprep.subr.bf16.mxu0 0
    %119 = vmatpush1.bf16.msra.mxu0 0
    %120 = vmatprep.subr.bf16.mxu0 0
    %121 = vmatpush1.bf16.msra.mxu0 0
    %122 = vmatprep.subr.bf16.mxu0 0
    %123 = vmatpush1.bf16.msra.mxu0 0
    %124 = vmatprep.subr.bf16.mxu0 0
    %125 = vmatpush1.bf16.msra.mxu0 0
    %126 = vmatprep.subr.bf16.mxu0 0
    %127 = vmatpush1.bf16.msra.mxu0 0
    %128 = vmatprep.mubr.bf16.mxu0 0
    %129 = vmatmul.mubr.bf16.gmra.mrb[0].mxu0 %v87
    %v130 = vpop.f32.mrb[0].mxu0
    %v131 = vadd.f32 %v68, %v130
    %v132 = vpop.f32.mrb[0].mxu0
    %v133 = vpop.f32.mrb[0].mxu0
    %v134 = vadd.f32 %v68, %v133
    %v135 = vpop.f32.mrb[0].mxu0
    %136 = vdwg.mxu0
    %v137 = vmax.f32 %v131, 0.0
    %v138 = vmax.f32 %v134, 0.0
    %v139 = vpack.c.bf16 %v138, %v137
    %v140 = vld [vmem:[#allocation2] sm:$0xff]
    %v141 = vld [vmem:[#allocation2 + $0x8] sm:$0xff]
    %v142 = vld [vmem:[#allocation2 + $0x10] sm:$0xff]
    %v143 = vld [vmem:[#allocation2 + $0x18] sm:$0xff]
    %v144 = vld [vmem:[#allocation2 + $0x20] sm:$0xff]
    %v145 = vld [vmem:[#allocation2 + $0x28] sm:$0xff]
    %v146 = vld [vmem:[#allocation2 + $0x30] sm:$0xff]
    %v147 = vld [vmem:[#allocation2 + $0x38] sm:$0xff]
    %v148 = vld [vmem:[#allocation2 + $0x40] sm:$0xff]
    %v149 = vld [vmem:[#allocation2 + $0x48] sm:$0xff]
    %v150 = vld [vmem:[#allocation2 + $0x50] sm:$0xff]
    %v151 = vld [vmem:[#allocation2 + $0x58] sm:$0xff]
    %v152 = vld [vmem:[#allocation2 + $0x60] sm:$0xff]
    %v153 = vld [vmem:[#allocation2 + $0x68] sm:$0xff]
    %v154 = vld [vmem:[#allocation2 + $0x70] sm:$0xff]
    %v155 = vld [vmem:[#allocation2 + $0x78] sm:$0xff]
    %v156 = vld [vmem:[%s4] sm:$0x3]
    %v158 = vlaneseq
    %v159 = vshrl.u32 %v158, 7
    %v160 = vsub.s32 0, %v159
    %v161 = vrot.slane %v156, %v160
    %v162 = vlaneseq
    %v163 = vshrl.u32 %v162, 7
    %v164 = vsub.s32 1, %v163
    %v165 = vrot.slane %v156, %v164
    %v184 = vunpack.c.l.b16 %v140
    %v185 = vunpack.c.h.b16 %v140
    %v186 = vunpack.c.l.b16 %v141
    %v187 = vunpack.c.h.b16 %v141
    %v188 = vunpack.c.l.b16 %v142
    %v189 = vunpack.c.h.b16 %v142
    %v190 = vunpack.c.l.b16 %v143
    %v191 = vunpack.c.h.b16 %v143
    %v192 = vunpack.c.l.b16 %v144
    %v193 = vunpack.c.h.b16 %v144
    %v194 = vunpack.c.l.b16 %v145
    %v195 = vunpack.c.h.b16 %v145
    %v196 = vunpack.c.l.b16 %v146
    %v197 = vunpack.c.h.b16 %v146
    %v198 = vunpack.c.l.b16 %v147
    %v199 = vunpack.c.h.b16 %v147
    %v200 = vunpack.c.l.b16 %v148
    %v201 = vunpack.c.h.b16 %v148
    %v202 = vunpack.c.l.b16 %v149
    %v203 = vunpack.c.h.b16 %v149
    %v204 = vunpack.c.l.b16 %v150
    %v205 = vunpack.c.h.b16 %v150
    %v206 = vunpack.c.l.b16 %v151
    %v207 = vunpack.c.h.b16 %v151
    %v208 = vunpack.c.l.b16 %v152
    %v209 = vunpack.c.h.b16 %v152
    %v210 = vunpack.c.l.b16 %v153
    %v211 = vunpack.c.h.b16 %v153
    %v212 = vunpack.c.l.b16 %v154
    %v213 = vunpack.c.h.b16 %v154
    %v214 = vunpack.c.l.b16 %v155
    %v215 = vunpack.c.h.b16 %v155
    %v216 = vpack.c.b16 %v186, %v184
    %v217 = vpack.c.b16 %v187, %v185
    %v218 = vpack.c.b16 %v190, %v188
    %v219 = vpack.c.b16 %v191, %v189
    %v220 = vpack.c.b16 %v194, %v192
    %v221 = vpack.c.b16 %v195, %v193
    %v222 = vpack.c.b16 %v198, %v196
    %v223 = vpack.c.b16 %v199, %v197
    %v224 = vpack.c.b16 %v202, %v200
    %v225 = vpack.c.b16 %v203, %v201
    %v226 = vpack.c.b16 %v206, %v204
    %v227 = vpack.c.b16 %v207, %v205
    %v228 = vpack.c.b16 %v210, %v208
    %v229 = vpack.c.b16 %v211, %v209
    %v230 = vpack.c.b16 %v214, %v212
    %v231 = vpack.c.b16 %v215, %v213
    %248 = vmatprep.subr.bf16.mxu0 %v217
    %249 = vmatpush1.bf16.msra.mxu0 %v216
    %250 = vmatprep.subr.bf16.mxu0 %v219
    %251 = vmatpush1.bf16.msra.mxu0 %v218
    %252 = vmatprep.subr.bf16.mxu0 %v221
    %253 = vmatpush1.bf16.msra.mxu0 %v220
    %254 = vmatprep.subr.bf16.mxu0 %v223
    %255 = vmatpush1.bf16.msra.mxu0 %v222
    %256 = vmatprep.subr.bf16.mxu0 %v225
    %257 = vmatpush1.bf16.msra.mxu0 %v224
    %258 = vmatprep.subr.bf16.mxu0 %v227
    %259 = vmatpush1.bf16.msra.mxu0 %v226
    %260 = vmatprep.subr.bf16.mxu0 %v229
    %261 = vmatpush1.bf16.msra.mxu0 %v228
    %262 = vmatprep.subr.bf16.mxu0 %v231
    %263 = vmatpush1.bf16.msra.mxu0 %v230
    %264 = vmatprep.subr.bf16.mxu0 0
    %265 = vmatpush1.bf16.msra.mxu0 0
    %266 = vmatprep.subr.bf16.mxu0 0
    %267 = vmatpush1.bf16.msra.mxu0 0
    %268 = vmatprep.subr.bf16.mxu0 0
    %269 = vmatpush1.bf16.msra.mxu0 0
    %270 = vmatprep.subr.bf16.mxu0 0
    %271 = vmatpush1.bf16.msra.mxu0 0
    %272 = vmatprep.subr.bf16.mxu0 0
    %273 = vmatpush1.bf16.msra.mxu0 0
    %274 = vmatprep.subr.bf16.mxu0 0
    %275 = vmatpush1.bf16.msra.mxu0 0
    %276 = vmatprep.subr.bf16.mxu0 0
    %277 = vmatpush1.bf16.msra.mxu0 0
    %278 = vmatprep.subr.bf16.mxu0 0
    %279 = vmatpush1.bf16.msra.mxu0 0
    %280 = vmatprep.mubr.bf16.mxu0 0
    %281 = vmatmul.mubr.bf16.gmra.mrb[0].mxu0 %v139
    %v282 = vpop.f32.mrb[0].mxu0
    %v283 = vadd.f32 %v161, %v282
    %v284 = vpop.f32.mrb[0].mxu0
    %v285 = vadd.f32 %v165, %v284
    %v286 = vpop.f32.mrb[0].mxu0
    %v287 = vadd.f32 %v161, %v286
    %v288 = vpop.f32.mrb[0].mxu0
    %v289 = vadd.f32 %v165, %v288
    %290 = vdwg.mxu0
    %v291 = vmax.f32 %v283, 0.0
    %v292 = vmax.f32 %v285, 0.0
    %v293 = vmax.f32 %v287, 0.0
    %v294 = vmax.f32 %v289, 0.0
    %v295 = vpack.c.bf16 %v293, %v291
    %v296 = vpack.c.bf16 %v294, %v292
    %v297 = vld [vmem:[#allocation4] sm:$0xf]
    %v298 = vld [vmem:[#allocation4 + $0x4] sm:$0xf]
    %v299 = vld [vmem:[#allocation4 + $0x8] sm:$0xf]
    %v300 = vld [vmem:[#allocation4 + $0xc] sm:$0xf]
    %v301 = vld [vmem:[#allocation4 + $0x10] sm:$0xf]
    %v302 = vld [vmem:[#allocation4 + $0x14] sm:$0xf]
    %v303 = vld [vmem:[#allocation4 + $0x18] sm:$0xf]
    %v304 = vld [vmem:[#allocation4 + $0x1c] sm:$0xf]
    %v305 = vld [vmem:[#allocation4 + $0x20] sm:$0xf]
    %v306 = vld [vmem:[#allocation4 + $0x24] sm:$0xf]
    %v307 = vld [vmem:[#allocation4 + $0x28] sm:$0xf]
    %v308 = vld [vmem:[#allocation4 + $0x2c] sm:$0xf]
    %v309 = vld [vmem:[#allocation4 + $0x30] sm:$0xf]
    %v310 = vld [vmem:[#allocation4 + $0x34] sm:$0xf]
    %v311 = vld [vmem:[#allocation4 + $0x38] sm:$0xf]
    %v312 = vld [vmem:[#allocation4 + $0x3c] sm:$0xf]
    %v313 = vld [vmem:[#allocation4 + $0x40] sm:$0xf]
    %v314 = vld [vmem:[#allocation4 + $0x44] sm:$0xf]
    %v315 = vld [vmem:[#allocation4 + $0x48] sm:$0xf]
    %v316 = vld [vmem:[#allocation4 + $0x4c] sm:$0xf]
    %v317 = vld [vmem:[#allocation4 + $0x50] sm:$0xf]
    %v318 = vld [vmem:[#allocation4 + $0x54] sm:$0xf]
    %v319 = vld [vmem:[#allocation4 + $0x58] sm:$0xf]
    %v320 = vld [vmem:[#allocation4 + $0x5c] sm:$0xf]
    %v321 = vld [vmem:[#allocation4 + $0x60] sm:$0xf]
    %v322 = vld [vmem:[#allocation4 + $0x64] sm:$0xf]
    %v323 = vld [vmem:[#allocation4 + $0x68] sm:$0xf]
    %v324 = vld [vmem:[#allocation4 + $0x6c] sm:$0xf]
    %v325 = vld [vmem:[#allocation4 + $0x70] sm:$0xf]
    %v326 = vld [vmem:[#allocation4 + $0x74] sm:$0xf]
    %v327 = vld [vmem:[#allocation4 + $0x78] sm:$0xf]
    %v328 = vld [vmem:[#allocation4 + $0x7c] sm:$0xf]
    %v329 = vld [vmem:[%s6] sm:$0x1]
    %v331 = vlaneseq
    %v332 = vshrl.u32 %v331, 7
    %v333 = vsub.s32 0, %v332
    %v334 = vrot.slane %v329, %v333
    %v368 = vunpack.c.l.b16 %v297
    %v369 = vunpack.c.l.b16 %v298
    %v370 = vunpack.c.l.b16 %v299
    %v371 = vunpack.c.l.b16 %v300
    %v372 = vunpack.c.l.b16 %v301
    %v373 = vunpack.c.l.b16 %v302
    %v374 = vunpack.c.l.b16 %v303
    %v375 = vunpack.c.l.b16 %v304
    %v376 = vunpack.c.l.b16 %v305
    %v377 = vunpack.c.l.b16 %v306
    %v378 = vunpack.c.l.b16 %v307
    %v379 = vunpack.c.l.b16 %v308
    %v380 = vunpack.c.l.b16 %v309
    %v381 = vunpack.c.l.b16 %v310
    %v382 = vunpack.c.l.b16 %v311
    %v383 = vunpack.c.l.b16 %v312
    %v384 = vunpack.c.l.b16 %v313
    %v385 = vunpack.c.l.b16 %v314
    %v386 = vunpack.c.l.b16 %v315
    %v387 = vunpack.c.l.b16 %v316
    %v388 = vunpack.c.l.b16 %v317
    %v389 = vunpack.c.l.b16 %v318
    %v390 = vunpack.c.l.b16 %v319
    %v391 = vunpack.c.l.b16 %v320
    %v392 = vunpack.c.l.b16 %v321
    %v393 = vunpack.c.l.b16 %v322
    %v394 = vunpack.c.l.b16 %v323
    %v395 = vunpack.c.l.b16 %v324
    %v396 = vunpack.c.l.b16 %v325
    %v397 = vunpack.c.l.b16 %v326
    %v398 = vunpack.c.l.b16 %v327
    %v399 = vunpack.c.l.b16 %v328
    %v400 = vpack.c.b16 %v369, %v368
    %v401 = vpack.c.b16 %v371, %v370
    %v402 = vpack.c.b16 %v373, %v372
    %v403 = vpack.c.b16 %v375, %v374
    %v404 = vpack.c.b16 %v377, %v376
    %v405 = vpack.c.b16 %v379, %v378
    %v406 = vpack.c.b16 %v381, %v380
    %v407 = vpack.c.b16 %v383, %v382
    %v408 = vpack.c.b16 %v385, %v384
    %v409 = vpack.c.b16 %v387, %v386
    %v410 = vpack.c.b16 %v389, %v388
    %v411 = vpack.c.b16 %v391, %v390
    %v412 = vpack.c.b16 %v393, %v392
    %v413 = vpack.c.b16 %v395, %v394
    %v414 = vpack.c.b16 %v397, %v396
    %v415 = vpack.c.b16 %v399, %v398
    %432 = vmatprep.subr.bf16.mxu0 0
    %433 = vmatpush1.bf16.msra.mxu0 %v400
    %434 = vmatprep.subr.bf16.mxu0 0
    %435 = vmatpush1.bf16.msra.mxu0 %v401
    %436 = vmatprep.subr.bf16.mxu0 0
    %437 = vmatpush1.bf16.msra.mxu0 %v402
    %438 = vmatprep.subr.bf16.mxu0 0
    %439 = vmatpush1.bf16.msra.mxu0 %v403
    %440 = vmatprep.subr.bf16.mxu0 0
    %441 = vmatpush1.bf16.msra.mxu0 %v404
    %442 = vmatprep.subr.bf16.mxu0 0
    %443 = vmatpush1.bf16.msra.mxu0 %v405
    %444 = vmatprep.subr.bf16.mxu0 0
    %445 = vmatpush1.bf16.msra.mxu0 %v406
    %446 = vmatprep.subr.bf16.mxu0 0
    %447 = vmatpush1.bf16.msra.mxu0 %v407
    %448 = vmatprep.subr.bf16.mxu0 0
    %449 = vmatpush1.bf16.msra.mxu0 %v408
    %450 = vmatprep.subr.bf16.mxu0 0
    %451 = vmatpush1.bf16.msra.mxu0 %v409
    %452 = vmatprep.subr.bf16.mxu0 0
    %453 = vmatpush1.bf16.msra.mxu0 %v410
    %454 = vmatprep.subr.bf16.mxu0 0
    %455 = vmatpush1.bf16.msra.mxu0 %v411
    %456 = vmatprep.subr.bf16.mxu0 0
    %457 = vmatpush1.bf16.msra.mxu0 %v412
    %458 = vmatprep.subr.bf16.mxu0 0
    %459 = vmatpush1.bf16.msra.mxu0 %v413
    %460 = vmatprep.subr.bf16.mxu0 0
    %461 = vmatpush1.bf16.msra.mxu0 %v414
    %462 = vmatprep.subr.bf16.mxu0 0
    %463 = vmatpush1.bf16.msra.mxu0 %v415
    %464 = vmatprep.mubr.bf16.mxu0 %v296
    %465 = vmatmul.mubr.bf16.gmra.mrb[0].mxu0 %v295
    %v466 = vpop.f32.mrb[0].mxu0
    %v467 = vadd.f32 %v334, %v466
    %v468 = vpop.f32.mrb[0].mxu0
    %v469 = vpop.f32.mrb[0].mxu0
    %v470 = vadd.f32 %v334, %v469
    %v471 = vpop.f32.mrb[0].mxu0
    %472 = vdwg.mxu0
    %v473 = vpack.c.bf16 %v470, %v467
    %v475 = vunpack.c.l.b16 %v473
    %v476 = vunpack.c.h.b16 %v473
    %v477 = vpack.c.b16 %v475, %v475
    %v478 = vpack.c.b16 %v476, %v476
    %481 = vst [vmem:[%s7] sm:$0xf] %v477
    %482 = vst [vmem:[%s7 + $0x4] sm:$0xf] %v478
    // Predicated region
    $region38: #{qnetwork_forward.1} parent=1 // pred_check
      _
    $region39: #{qnetwork_forward.1} parent=1 // pred_check_branch
      %484 = sbr.rel (0) target = $region41
    $region40: #{qnetwork_forward.1} parent=1 // pred_region
      _
    $region41: #{qnetwork_forward.1} parent=1 // pred_fallthru
      _
    // Predicated region
    $region42: #{qnetwork_forward.1} parent=1 // pred_check
      _
    $region43: #{qnetwork_forward.1} parent=1 // pred_check_branch
      %486 = sbr.rel (0) target = $region45
    $region44: #{qnetwork_forward.1} parent=1 // pred_region
      _
    $region45: #{qnetwork_forward.1} parent=1 // pred_fallthru
      _
    %487 = vsyncpa [#allocation3], 1
    %488 = vsyncpa [#allocation5], 1

</llo_original>
